<compile_context>
chip_gen: v5e
topology: v5e:2x2
jax: 0.10.0
libtpu: 0.0.40
codegen_flags: <defaults>
</compile_context>

<pallas_src>
import functools

import jax
import jax.numpy as jnp
from jax import lax
from jax.experimental import pallas as pl
from jax.experimental.pallas import tpu as pltpu

LANE = 128


def _round_down(a, m):
    return (a // m) * m


def _cdiv(a, b):
    return -(-a // b)


def _psnr_partial_kernel(x_ref, y_ref, sum_ref, max_ref, *, br, chunk, rows,
                         steps, full_blocks, need_mask, use_pack16):
    """Accumulate per-split partial sum((x - y)^2) and max(x).

    x_ref, y_ref : (br, 128) input blocks, native dtype.
    sum_ref, max_ref : (8, 128) f32 output accumulators (one block per split).
    """
    s = pl.program_id(0)   # outer, independent ("parallel") split axis
    i = pl.program_id(1)   # inner, sequential reduction axis

    @pl.when(i == 0)
    def _():
        sum_ref[...] = jnp.zeros_like(sum_ref)
        max_ref[...] = jnp.full_like(max_ref, -jnp.inf)

    n_chunks = br // chunk
    unroll = max(1, min(8, n_chunks))

    def _accumulate(c, valid_rows):
        # One (chunk, 128) pass: load x/y from VMEM once, fused sum + max.
        off = pl.multiple_of(c * chunk, chunk)
        xn = x_ref[pl.ds(off, chunk), :]
        yn = y_ref[pl.ds(off, chunk), :]
        d = xn.astype(jnp.float32) - yn.astype(jnp.float32)
        # Max path operand: packed native 16-bit vregs when possible,
        # otherwise f32 (max is exact either way).
        xm = xn if use_pack16 else xn.astype(jnp.float32)

        if valid_rows is not None:
            # Row-level tail mask (only code-generated when the static tiling
            # has partial / duplicate blocks).
            ok = (lax.broadcasted_iota(jnp.int32, (chunk, 1), 0) + off) < valid_rows
            d = jnp.where(ok, d, 0.0)
            xm = jnp.where(ok, xm, jnp.full_like(xm, -jnp.inf))

        # Sum path: the reshape keeps every (8,128) vreg tile intact, so the
        # axis-0 reduction is a chain of plain VPU adds.
        sq = (d * d).reshape(chunk // 8, 8, LANE)
        sum_ref[...] = sum_ref[...] + jnp.sum(sq, axis=0)

        if use_pack16:
            m16 = jnp.max(xm.reshape(chunk // 16, 16, LANE), axis=0)
            mx = jnp.max(m16.astype(jnp.float32).reshape(2, 8, LANE), axis=0)
        else:
            mx = jnp.max(xm.reshape(chunk // 8, 8, LANE), axis=0)
        max_ref[...] = jnp.maximum(max_ref[...], mx)

    def _fast(c, carry):
        _accumulate(c, None)
        return carry

    if need_mask:
        b = s * steps + i            # true block index (may be partial / dup)

        @pl.when(b < full_blocks)
        def _():
            lax.fori_loop(0, n_chunks, _fast, 0, unroll=unroll)

        @pl.when(b >= full_blocks)
        def _():
            valid_rows = rows - b * br   # rows of this block that exist (<= 0 ok)

            def _masked(c, carry):
                _accumulate(c, valid_rows)
                return carry

            lax.fori_loop(0, n_chunks, _masked, 0)
    else:
        lax.fori_loop(0, n_chunks, _fast, 0, unroll=unroll)


def psnr_pallas(x, y, *, block_rows=None, chunk_rows=256, num_splits=2,
                block_bytes=4 << 20):
    """PSNR(x, y) with mean-over-all-elements MSE (matches the torch module)."""
    assert x.shape == y.shape, (x.shape, y.shape)
    total = x.size
    assert total > 0

    xf = x.reshape(-1)
    yf = y.reshape(-1)

    rows = total // LANE
    tail = total - rows * LANE

    def finalize(sse, mx):
        mse = sse / jnp.float32(total)
        psnr = 10.0 * jnp.log10(mx * mx / mse)
        return jnp.where(mse == 0.0, jnp.float32(jnp.inf), psnr)

    if rows < 8:
        # Tiny input (< 1024 elements): not worth a kernel launch.
        d = xf.astype(jnp.float32) - yf.astype(jnp.float32)
        return finalize(jnp.sum(d * d), jnp.max(xf.astype(jnp.float32)))

    main = rows * LANE
    if tail:
        # TODO(synk): this prefix slice copies the main part in HBM when the
        # size is not a multiple of 128; avoiding it would need a manual-DMA
        # (memory_space=pl.ANY) kernel over the flat 1-D array.
        x_main, y_main = xf[:main], yf[:main]
    else:
        x_main, y_main = xf, yf

    x2 = x_main.reshape(rows, LANE)   # native dtype: no wrapper-side f32 cast
    y2 = y_main.reshape(rows, LANE)

    # ---- tiling plan (all static Python ints) -----------------------------
    itembytes = jnp.dtype(x.dtype).itemsize + jnp.dtype(y.dtype).itemsize
    if block_rows is None:
        # ~block_bytes per input per block: 8192 rows f32, 16384 rows bf16.
        br = (2 * block_bytes) // (LANE * itembytes)
    else:
        br = int(block_rows)
    br = max(8, min(_round_down(br, 8), _round_down(rows, 8)))
    chunk = max(8, min(_round_down(int(chunk_rows), 8), br))
    br = _round_down(br, chunk)                       # chunk divides br

    num_blocks = _cdiv(rows, br)
    splits = max(1, min(int(num_splits), num_blocks))
    steps = _cdiv(num_blocks, splits)                 # balanced (+/- 1 block)
    full_blocks = rows // br
    need_mask = (rows % br != 0) or (splits * steps != num_blocks)

    use_pack16 = (x.dtype in (jnp.bfloat16, jnp.float16)) and (chunk % 16 == 0)

    # Double-buffered input blocks must fit the scoped VMEM window on every
    # generation (v5e default is only 16 MiB; v7x physical VMEM is 64 MiB).
    buf_bytes = 2 * br * LANE * itembytes
    vmem_limit = int(min(56 << 20, max(32 << 20, buf_bytes + (8 << 20))))

    kernel = functools.partial(
        _psnr_partial_kernel, br=br, chunk=chunk, rows=rows, steps=steps,
        full_blocks=full_blocks, need_mask=need_mask, use_pack16=use_pack16)

    # Clamp the block index so duplicate grid steps (unbalanced split) stay
    # in-bounds; the kernel masks them out by their true block index.
    def in_map(s, i):
        return (jnp.minimum(s * steps + i, num_blocks - 1), 0)

    sum_part, max_part = pl.pallas_call(
        kernel,
        out_shape=(
            jax.ShapeDtypeStruct((splits * 8, LANE), jnp.float32),
            jax.ShapeDtypeStruct((splits * 8, LANE), jnp.float32),
        ),
        grid_spec=pltpu.PrefetchScalarGridSpec(
            num_scalar_prefetch=0,
            grid=(splits, steps),
            in_specs=[
                pl.BlockSpec((br, LANE), in_map),
                pl.BlockSpec((br, LANE), in_map),
            ],
            out_specs=[
                pl.BlockSpec((8, LANE), lambda s, i: (s, 0)),
                pl.BlockSpec((8, LANE), lambda s, i: (s, 0)),
            ],
        ),
        compiler_params=pltpu.CompilerParams(
            # Outer split axis is independent (shards across v7x's two TCs);
            # inner axis is the sequential reduction over row blocks.
            dimension_semantics=("parallel", "arbitrary"),
            vmem_limit_bytes=vmem_limit,
        ),
    )(x2, y2)

    # ---- tiny JAX epilogue: final reduce + ragged tail + log10/inf --------
    sse = jnp.sum(sum_part)
    mx = jnp.max(max_part)
    if tail:
        xt = xf[main:].astype(jnp.float32)
        yt = yf[main:].astype(jnp.float32)
        dt = xt - yt
        sse = sse + jnp.sum(dt * dt)
        mx = jnp.maximum(mx, jnp.max(xt))
    return finalize(sse, mx)


def psnr_ref(x, y):
    x = x.astype(jnp.float32)
    y = y.astype(jnp.float32)
    mse = jnp.mean((x - y) ** 2)
    mx = jnp.max(x)
    return jnp.where(mse == 0.0, jnp.inf, 10.0 * jnp.log10(mx * mx / mse))


if __name__ == "__main__":
    key = jax.random.PRNGKey(0)
    kx, ky, ka, kb = jax.random.split(key, 4)

    # NCHW, as the PyTorch module would consume.
    x = jax.random.uniform(kx, (2, 4, 16, 16), dtype=jnp.float32)
    y = jax.random.uniform(ky, (2, 4, 16, 16), dtype=jnp.float32)

    got = jax.block_until_ready(psnr_pallas(x, y))
    want = jax.block_until_ready(psnr_ref(x, y))
    assert jnp.allclose(got, want, rtol=1e-5, atol=1e-5), (got, want)

    # Degenerate case: identical inputs -> inf (mirrors the torch branch).
    same = jax.block_until_ready(psnr_pallas(x, x))
    assert jnp.isinf(same), same

    # Multi-block / multi-split path (small block_rows forces several grid
    # steps across both splits).
    a = jax.random.normal(ka, (2, 4, 32, 64), dtype=jnp.float32)
    b = jax.random.normal(kb, (2, 4, 32, 64), dtype=jnp.float32)
    got2 = jax.block_until_ready(psnr_pallas(a, b, block_rows=32))
    want2 = jax.block_until_ready(psnr_ref(a, b))
    assert jnp.allclose(got2, want2, rtol=1e-5, atol=1e-5), (got2, want2)

    # Ragged row count (rows not a multiple of the block): masked tail block
    # handled inside the kernel -- no wrapper-side padding / concatenate.
    c = jax.random.normal(ka, (5, 7, 128), dtype=jnp.float32)
    d = jax.random.normal(kb, (5, 7, 128), dtype=jnp.float32)
    got3 = jax.block_until_ready(psnr_pallas(c, d))
    want3 = jax.block_until_ready(psnr_ref(c, d))
    assert jnp.allclose(got3, want3, rtol=1e-5, atol=1e-5), (got3, want3)

    # Native bf16 inputs with a sub-128-element ragged tail: bf16 stays bf16
    # in HBM (half the traffic), the max tree runs on packed bf16 vregs, and
    # the tiny tail is folded in by the epilogue.
    xb16 = jax.random.normal(ka, (3, 5, 140), dtype=jnp.float32).astype(jnp.bfloat16)
    yb16 = jax.random.normal(kb, (3, 5, 140), dtype=jnp.float32).astype(jnp.bfloat16)
    got4 = jax.block_until_ready(psnr_pallas(xb16, yb16))
    want4 = jax.block_until_ready(psnr_ref(xb16, yb16))
    assert jnp.allclose(got4, want4, rtol=1e-4, atol=1e-4), (got4, want4)

    print("KERNEL_OK")
</pallas_src>

<mosaic_0001>
module attributes {stable_mosaic.version = 11 : i64} {
  func.func @_psnr_partial_kernel(%arg0: i32, %arg1: i32, %arg2: memref<16x128xf32, #tpu.memory_space<vmem>>, %arg3: memref<16x128xf32, #tpu.memory_space<vmem>>, %arg4: memref<8x128xf32, #tpu.memory_space<vmem>>, %arg5: memref<8x128xf32, #tpu.memory_space<vmem>>) attributes {dimension_semantics = [#tpu.dimension_semantics<parallel>, #tpu.dimension_semantics<arbitrary>], iteration_bounds = array<i64: 1, 1>, scalar_prefetch = 0 : i64, scratch_operands = 0 : i64, tpu.core_type = #tpu.core_type<tc>, window_params = [{transform_indices = @transform_0, window_bounds = array<i64: 16, 128>}, {transform_indices = @transform_1, window_bounds = array<i64: 16, 128>}, {transform_indices = @transform_2, window_bounds = array<i64: 8, 128>}, {transform_indices = @transform_3, window_bounds = array<i64: 8, 128>}]} {
    %c0_i32 = arith.constant 0 : i32
    %0 = arith.cmpi eq, %arg1, %c0_i32 : i32
    %1 = arith.extui %0 : i1 to i32
    %c0_i32_0 = arith.constant 0 : i32
    %2 = arith.cmpi ne, %1, %c0_i32_0 : i32
    scf.if %2 {
      %cst_12 = arith.constant 0.000000e+00 : f32
      %21 = vector.broadcast %cst_12 : f32 to vector<8x128xf32>
      %c0_13 = arith.constant 0 : index
      %c0_14 = arith.constant 0 : index
      %22 = vector.load %arg4[%c0_13, %c0_14] : memref<8x128xf32, #tpu.memory_space<vmem>>, vector<8x128xf32>
      tpu.vector_store %arg4[%c0_13, %c0_14], %21 {strides = array<i32>} : memref<8x128xf32, #tpu.memory_space<vmem>>, vector<8x128xf32>,
      %cst_15 = arith.constant 0xFF800000 : f32
      %23 = vector.broadcast %cst_15 : f32 to vector<8x128xf32>
      %c0_16 = arith.constant 0 : index
      %c0_17 = arith.constant 0 : index
      %24 = vector.load %arg5[%c0_16, %c0_17] : memref<8x128xf32, #tpu.memory_space<vmem>>, vector<8x128xf32>
      tpu.vector_store %arg5[%c0_16, %c0_17], %23 {strides = array<i32>} : memref<8x128xf32, #tpu.memory_space<vmem>>, vector<8x128xf32>,
    } else {
    }
    %c0_i32_1 = arith.constant 0 : i32
    %c16_i32 = arith.constant 16 : i32
    %3 = arith.muli %c0_i32_1, %c16_i32 : i32
    %4 = tpu.assume_multiple %3, 16 : i32
    %5 = arith.index_cast %4 : i32 to index
    %c0 = arith.constant 0 : index
    %6 = vector.load %arg2[%5, %c0] : memref<16x128xf32, #tpu.memory_space<vmem>>, vector<16x128xf32>
    %7 = arith.index_cast %4 : i32 to index
    %c0_2 = arith.constant 0 : index
    %8 = vector.load %arg3[%7, %c0_2] : memref<16x128xf32, #tpu.memory_space<vmem>>, vector<16x128xf32>
    %9 = arith.subf %6, %8 : vector<16x128xf32>
    %10 = arith.mulf %9, %9 : vector<16x128xf32>
    %11 = vector.shape_cast %10 : vector<16x128xf32> to vector<2x8x128xf32>
    %c0_3 = arith.constant 0 : index
    %c0_4 = arith.constant 0 : index
    %12 = vector.load %arg4[%c0_3, %c0_4] : memref<8x128xf32, #tpu.memory_space<vmem>>, vector<8x128xf32>
    %cst = arith.constant dense<0.000000e+00> : vector<8x128xf32>
    %13 = vector.multi_reduction <add>, %11, %cst [0] : vector<2x8x128xf32> to vector<8x128xf32>
    %14 = arith.addf %12, %13 : vector<8x128xf32>
    %c0_5 = arith.constant 0 : index
    %c0_6 = arith.constant 0 : index
    %15 = vector.load %arg4[%c0_5, %c0_6] : memref<8x128xf32, #tpu.memory_space<vmem>>, vector<8x128xf32>
    tpu.vector_store %arg4[%c0_5, %c0_6], %14 {strides = array<i32>} : memref<8x128xf32, #tpu.memory_space<vmem>>, vector<8x128xf32>,
    %16 = vector.shape_cast %6 : vector<16x128xf32> to vector<2x8x128xf32>
    %cst_7 = arith.constant dense<0xFF800000> : vector<8x128xf32>
    %17 = vector.multi_reduction <maximumf>, %16, %cst_7 [0] : vector<2x8x128xf32> to vector<8x128xf32>
    %c0_8 = arith.constant 0 : index
    %c0_9 = arith.constant 0 : index
    %18 = vector.load %arg5[%c0_8, %c0_9] : memref<8x128xf32, #tpu.memory_space<vmem>>, vector<8x128xf32>
    %19 = arith.maximumf %18, %17 : vector<8x128xf32>
    %c0_10 = arith.constant 0 : index
    %c0_11 = arith.constant 0 : index
    %20 = vector.load %arg5[%c0_10, %c0_11] : memref<8x128xf32, #tpu.memory_space<vmem>>, vector<8x128xf32>
    tpu.vector_store %arg5[%c0_10, %c0_11], %19 {strides = array<i32>} : memref<8x128xf32, #tpu.memory_space<vmem>>, vector<8x128xf32>,
    %c1_i32 = arith.constant 1 : i32
    return
  }
  func.func @transform_0(%arg0: i32, %arg1: i32) -> (i32, i32) {
    %c1_i32 = arith.constant 1 : i32
    %0 = arith.muli %arg0, %c1_i32 : i32
    %1 = arith.addi %0, %arg1 : i32
    %c0_i32 = arith.constant 0 : i32
    %2 = arith.minsi %1, %c0_i32 : i32
    %c0_i32_0 = arith.constant 0 : i32
    %c0_i32_1 = arith.constant 0 : i32
    return %2, %c0_i32_0 : i32, i32
  }
  func.func @transform_1(%arg0: i32, %arg1: i32) -> (i32, i32) {
    %c1_i32 = arith.constant 1 : i32
    %0 = arith.muli %arg0, %c1_i32 : i32
    %1 = arith.addi %0, %arg1 : i32
    %c0_i32 = arith.constant 0 : i32
    %2 = arith.minsi %1, %c0_i32 : i32
    %c0_i32_0 = arith.constant 0 : i32
    %c0_i32_1 = arith.constant 0 : i32
    return %2, %c0_i32_0 : i32, i32
  }
  func.func @transform_2(%arg0: i32, %arg1: i32) -> (i32, i32) {
    %c0_i32 = arith.constant 0 : i32
    %c0_i32_0 = arith.constant 0 : i32
    return %arg0, %c0_i32 : i32, i32
  }
  func.func @transform_3(%arg0: i32, %arg1: i32) -> (i32, i32) {
    %c0_i32 = arith.constant 0 : i32
    %c0_i32_0 = arith.constant 0 : i32
    return %arg0, %c0_i32 : i32, i32
  }
}

</mosaic_0001>

<llo_original>
// kernel: tpu_custom_call.1
$region0: #{tpu_custom_call.1}
  #allocation0 [shape = 'u32[]', space=smem, size = 0x4, offset = 0x4, fixed_abs, tag = 'smem constant byte address 0x4 - core index']
  #allocation1 [shape = 'u32[72,128]{1,0:T(1,128)}', space=vmem, size = 0x9000, scoped, tag = 'internal scratch']
  %s0 = inlined_call_operand.hbm [shape: f32[16,128], index: 0, kind: input, shape index: {}]
  %s1 = inlined_call_operand.hbm [shape: f32[16,128], index: 1, kind: input, shape index: {}]
  %s2 = inlined_call_operand.hbm [shape: f32[8,128], index: 2, kind: output, shape index: {0}]
  %s3 = inlined_call_operand.hbm [shape: f32[8,128], index: 3, kind: output, shape index: {1}]
  %4 = xla_tuple %s2, %s3
  %s5 = sld [smem:[#allocation0]]
  $region38: #{tpu_custom_call.1} parent=0
    _
  %s7 = ssub.s32 1, %s5
  %s8 = scalar_select 0, %s7, %s5
  $region1: #{tpu_custom_call.1} parent=0
    #allocation2 [shape = 'u8[8192]{0}', space=vmem, size = 0x2000, scoped, tag = 'input window, operand 0, single buffered']
    #allocation3 [shape = 's32[1]{0}', space=sflag, size = 0x4, scoped, tag = 'scoped memory for tpu_custom_call.1']
    #allocation4 [shape = 's32[1]{0}', space=sflag, size = 0x4, scoped, tag = 'scoped memory for tpu_custom_call.1']
    #allocation5 [shape = 'u8[8192]{0}', space=vmem, size = 0x2000, scoped, tag = 'input window, operand 1, single buffered']
    #allocation6 [shape = 's32[1]{0}', space=sflag, size = 0x4, scoped, tag = 'scoped memory for tpu_custom_call.1']
    #allocation7 [shape = 'u8[4096]{0}', space=vmem, size = 0x1000, scoped, tag = 'output window, operand 0, single buffered']
    #allocation8 [shape = 'u8[4096]{0}', space=vmem, size = 0x1000, scoped, tag = 'output window, operand 1, single buffered']
    #allocation9 [shape = 's32[1]{0}', space=sflag, size = 0x4, scoped, tag = 'scoped memory for tpu_custom_call.1']
    %9 = vsyncpa [#allocation3], 0
    %10 = vsyncpa [#allocation6], 0
    %11 = vsyncpa [#allocation4], 0
    %12 = vsyncpa [#allocation9], 0
    // Predicated region
    $region2: #{tpu_custom_call.1} parent=1 // pred_check
      _
    $region3: #{tpu_custom_call.1} parent=1 // pred_check_branch
      %14 = sbr.rel (0) target = $region5
    $region4: #{tpu_custom_call.1} parent=1 // pred_region
      %s15 = sadd.s32 0, 0
      %p16 = scmp.lt.s32.totalorder %s15, 0
      %s17 = scalar_select %p16, %s15, 0
      %s18 = smul.u32 2, %s17
      %20 = vsyncadd [#allocation3], 0
      %s21 = smul.addr %s18, 8
      %s22 = scalar_lea.hbm %s0, %s21
      %s23 = sshll.u32 %s22, 4
      %s24 = int_to_ptr.hbm [resolvable:$true] %s23
      %s25 = sshll.u32 [#allocation2], 4
      %s26 = int_to_ptr.vmem [resolvable:$true] %s25
      %31 = dma.hbm_to_vmem [thread:$0]  %s24, 256, %s26, [#allocation3], 128, 128, 8
    $region5: #{tpu_custom_call.1} parent=1 // pred_fallthru
      _
    // Predicated region
    $region6: #{tpu_custom_call.1} parent=1 // pred_check
      _
    $region7: #{tpu_custom_call.1} parent=1 // pred_check_branch
      %33 = sbr.rel (0) target = $region9
    $region8: #{tpu_custom_call.1} parent=1 // pred_region
      %s34 = sadd.s32 0, 0
      %p35 = scmp.lt.s32.totalorder %s34, 0
      %s36 = scalar_select %p35, %s34, 0
      %s37 = smul.u32 2, %s36
      %39 = vsyncadd [#allocation6], 0
      %s40 = smul.addr %s37, 8
      %s41 = scalar_lea.hbm %s1, %s40
      %s42 = sshll.u32 %s41, 4
      %s43 = int_to_ptr.hbm [resolvable:$true] %s42
      %s44 = sshll.u32 [#allocation5], 4
      %s45 = int_to_ptr.vmem [resolvable:$true] %s44
      %50 = dma.hbm_to_vmem [thread:$0]  %s43, 256, %s45, [#allocation6], 128, 128, 8
    $region9: #{tpu_custom_call.1} parent=1 // pred_fallthru
      _
    // Predicated region
    $region10: #{tpu_custom_call.1} parent=1 // pred_check
      _
    $region11: #{tpu_custom_call.1} parent=1 // pred_check_branch
      %52 = sbr.rel (0) target = $region13
    $region12: #{tpu_custom_call.1} parent=1 // pred_region
      %54 = dma.done [#allocation3], 256
    $region13: #{tpu_custom_call.1} parent=1 // pred_fallthru
      _
    // Predicated region
    $region14: #{tpu_custom_call.1} parent=1 // pred_check
      _
    $region15: #{tpu_custom_call.1} parent=1 // pred_check_branch
      %56 = sbr.rel (0) target = $region17
    $region16: #{tpu_custom_call.1} parent=1 // pred_region
      %58 = dma.done [#allocation6], 256
    $region17: #{tpu_custom_call.1} parent=1 // pred_fallthru
      _
    %s59 = sadd.s32 0, 0
    %p60 = scmp.lt.s32.totalorder %s59, 0
    %s61 = scalar_select %p60, %s59, 0
    %s62 = smul.u32 2, %s61
    %s63 = sadd.s32 0, 0
    %p64 = scmp.lt.s32.totalorder %s63, 0
    %s65 = scalar_select %p64, %s63, 0
    %s66 = smul.u32 2, %s65
    %p67 = scmp.eq.s32.totalorder 0, 0
    // Predicated region
    $region18: #{tpu_custom_call.1} parent=1 // pred_check
      %p68 = pneg %p67
    $region19: #{tpu_custom_call.1} parent=1 // pred_check_branch
      %70 = sbr.rel (%p68) target = $region21
    $region20: #{tpu_custom_call.1} parent=1 // pred_region
      %71 = vst [vmem:[#allocation7] sm:$0xff] 0.0
      %72 = vst [vmem:[#allocation8] sm:$0xff] -inf
    $region21: #{tpu_custom_call.1} parent=1 // pred_fallthru
      _
    %v73 = vld [vmem:[#allocation2] sm:$0xff]
    %v74 = vld [vmem:[#allocation2 + $0x8] sm:$0xff]
    %v75 = vld [vmem:[#allocation5] sm:$0xff]
    %v76 = vld [vmem:[#allocation5 + $0x8] sm:$0xff]
    %v77 = vsub.f32 %v73, %v75
    %v78 = vsub.f32 %v74, %v76
    %v79 = vmul.f32 %v77, %v77
    %v80 = vmul.f32 %v78, %v78
    %v81 = vld [vmem:[#allocation7] sm:$0xff]
    %v82 = vadd.f32 %v79, %v80
    %v83 = vadd.f32 %v81, %v82
    %84 = vst [vmem:[#allocation7] sm:$0xff] %v83
    %v85 = vmax.f32 %v73, %v74
    %v86 = vld [vmem:[#allocation8] sm:$0xff]
    %v87 = vmax.f32 %v86, %v85
    %88 = vst [vmem:[#allocation8] sm:$0xff] %v87
    // Predicated region
    $region22: #{tpu_custom_call.1} parent=1 // pred_check
      _
    $region23: #{tpu_custom_call.1} parent=1 // pred_check_branch
      %90 = sbr.rel (0) target = $region25
    $region24: #{tpu_custom_call.1} parent=1 // pred_region
      %92 = vsyncadd [#allocation4], 0
      %s94 = sshll.u32 [#allocation7], 4
      %s95 = int_to_ptr.vmem [resolvable:$true] %s94
      %s96 = sshll.u32 %s2, 4
      %s97 = int_to_ptr.hbm [resolvable:$true] %s96
      %99 = dma.vmem_to_hbm [thread:$0]  %s95, 128, %s97, [#allocation4]
    $region25: #{tpu_custom_call.1} parent=1 // pred_fallthru
      _
    // Predicated region
    $region26: #{tpu_custom_call.1} parent=1 // pred_check
      _
    $region27: #{tpu_custom_call.1} parent=1 // pred_check_branch
      %101 = sbr.rel (0) target = $region29
    $region28: #{tpu_custom_call.1} parent=1 // pred_region
      %103 = vsyncadd [#allocation9], 0
      %s105 = sshll.u32 [#allocation8], 4
      %s106 = int_to_ptr.vmem [resolvable:$true] %s105
      %s107 = sshll.u32 %s3, 4
      %s108 = int_to_ptr.hbm [resolvable:$true] %s107
      %110 = dma.vmem_to_hbm [thread:$0]  %s106, 128, %s108, [#allocation9]
    $region29: #{tpu_custom_call.1} parent=1 // pred_fallthru
      _
    // Predicated region
    $region30: #{tpu_custom_call.1} parent=1 // pred_check
      _
    $region31: #{tpu_custom_call.1} parent=1 // pred_check_branch
      %112 = sbr.rel (0) target = $region33
    $region32: #{tpu_custom_call.1} parent=1 // pred_region
      %114 = dma.done [#allocation4], 128
    $region33: #{tpu_custom_call.1} parent=1 // pred_fallthru
      _
    // Predicated region
    $region34: #{tpu_custom_call.1} parent=1 // pred_check
      _
    $region35: #{tpu_custom_call.1} parent=1 // pred_check_branch
      %116 = sbr.rel (0) target = $region37
    $region36: #{tpu_custom_call.1} parent=1 // pred_region
      %118 = dma.done [#allocation9], 128
    $region37: #{tpu_custom_call.1} parent=1 // pred_fallthru
      _
    %119 = vsyncpa [#allocation3], 1
    %120 = vsyncpa [#allocation6], 1
    %121 = vsyncpa [#allocation4], 1
    %122 = vsyncpa [#allocation9], 1

</llo_original>
